<compile_context>
chip_gen: v7x
topology: tpu7x:2x2x1
jax: 0.10.0
libtpu: 0.0.40
codegen_flags: <defaults>
</compile_context>

<pallas_src>
import jax
import jax.numpy as jnp
from jax.experimental import pallas as pl
from jax.experimental.pallas import tpu as pltpu


HIDDEN = 128


def _round_up(x, m):
    return (x + m - 1) // m * m


def mlp_kernel(x_ref, w1_ref, b1_ref, w2_ref, b2_ref, w3_ref, b3_ref,
               w4_ref, b4_ref, o_ref):
    """Fused 4-layer MLP with ReLU after every layer, all operands in VMEM.

    x_ref : (TB, d_in)                 natural input width (d_in == full array dim)
    wK_ref: (in_features, out_features) pre-transposed PyTorch weights
    bK_ref: (1, out_features)
    o_ref : (TB, d_out)                natural output width
    """
    h = jnp.dot(x_ref[...], w1_ref[...],
                preferred_element_type=jnp.float32) + b1_ref[...]
    h = jnp.maximum(h, 0.0)

    h = jnp.dot(h, w2_ref[...], preferred_element_type=jnp.float32) + b2_ref[...]
    h = jnp.maximum(h, 0.0)

    h = jnp.dot(h, w3_ref[...], preferred_element_type=jnp.float32) + b3_ref[...]
    h = jnp.maximum(h, 0.0)

    h = jnp.dot(h, w4_ref[...], preferred_element_type=jnp.float32) + b4_ref[...]
    h = jnp.maximum(h, 0.0)

    o_ref[...] = h.astype(o_ref.dtype)


def mlp_forward(x, params, *, tile_batch=1024):
    """Run the fused MLP Pallas kernel.

    Args:
      x: (N, input_dim) float32, arbitrary N.
      params: dict with w1..w4 of shape (in_features, out_features) and
              b1..b4 of shape (1, out_features)  (PyTorch weights, transposed).
      tile_batch: target batch rows per grid step (sweep 512/1024/2048).
    Returns:
      (N, output_dim) float32.
    """
    N, d_in = x.shape
    w1, b1 = params["w1"], params["b1"]
    w2, b2 = params["w2"], params["b2"]
    w3, b3 = params["w3"], params["b3"]
    w4, b4 = params["w4"], params["b4"]
    d_out = w4.shape[1]

    # Tile selection:
    #  * cap at round_up(ceil(N/2), 256) so large batches always produce >= 2 grid
    #    steps (both v7x TensorCores get work; no-op for v5e/v6e).
    #  * cap at round_up(N, 8) so tiny batches don't pad to a huge tile.
    #  * floor at 8 to respect the (8,128) sublane rule.
    tb = max(8, min(tile_batch,
                    _round_up(pl.cdiv(N, 2), 256),
                    _round_up(N, 8)))
    n_p = _round_up(N, tb)
    grid = (n_p // tb,)

    # Only materialize a padded copy when actually needed.
    x_in = x if n_p == N else jnp.pad(x, ((0, n_p - N), (0, 0)))

    # Advisory cost estimate (unpadded feature dims).
    flops = 2 * n_p * (d_in * HIDDEN + 2 * HIDDEN * HIDDEN + HIDDEN * d_out)
    bytes_accessed = 4 * (
        n_p * d_in + n_p * d_out
        + w1.size + b1.size + w2.size + b2.size
        + w3.size + b3.size + w4.size + b4.size
    )

    def resident(shape):
        # Constant block index across the grid -> Pallas keeps it resident
        # (no per-step re-DMA of weights/biases).
        return pl.BlockSpec(shape, lambda i: (0, 0))

    out = pl.pallas_call(
        mlp_kernel,
        out_shape=jax.ShapeDtypeStruct((n_p, d_out), jnp.float32),
        grid_spec=pltpu.PrefetchScalarGridSpec(
            num_scalar_prefetch=0,
            grid=grid,
            in_specs=[
                pl.BlockSpec((tb, d_in), lambda i: (i, 0)),
                resident(w1.shape), resident(b1.shape),
                resident(w2.shape), resident(b2.shape),
                resident(w3.shape), resident(b3.shape),
                resident(w4.shape), resident(b4.shape),
            ],
            out_specs=pl.BlockSpec((tb, d_out), lambda i: (i, 0)),
        ),
        compiler_params=pltpu.CompilerParams(
            dimension_semantics=("parallel",),
            # Explicit limit: safe on v5e (16 MiB scoped default), v6e (32 MiB),
            # v7x (64 MiB physical). Largest tiles need well under 8 MiB.
            vmem_limit_bytes=32 * 1024 * 1024,
        ),
        cost_estimate=pl.CostEstimate(
            flops=flops, transcendentals=0, bytes_accessed=bytes_accessed),
    )(x_in, w1, b1, w2, b2, w3, b3, w4, b4)

    # Drop padded batch rows only if we padded.
    return out if n_p == N else out[:N]


def init_params(key, input_dim, output_dim):
    """Deterministic synthetic parameters (PyTorch Linear init, pre-transposed)."""
    ks = jax.random.split(key, 8)
    dims = [(input_dim, HIDDEN), (HIDDEN, HIDDEN), (HIDDEN, HIDDEN), (HIDDEN, output_dim)]
    params = {}
    for idx, (fan_in, fan_out) in enumerate(dims, start=1):
        bound = 1.0 / jnp.sqrt(jnp.float32(fan_in))
        w = jax.random.uniform(ks[2 * (idx - 1)], (fan_in, fan_out),
                               jnp.float32, -bound, bound)
        b = jax.random.uniform(ks[2 * (idx - 1) + 1], (1, fan_out),
                               jnp.float32, -bound, bound)
        params[f"w{idx}"] = w
        params[f"b{idx}"] = b
    return params


def mlp_reference(x, params):
    h = x
    for idx in range(1, 5):
        h = jnp.maximum(h @ params[f"w{idx}"] + params[f"b{idx}"], 0.0)
    return h


if __name__ == "__main__":
    key = jax.random.PRNGKey(0)
    k_x, k_p, k_x2, k_p2 = jax.random.split(key, 4)

    # Small shapes consistent with the module: (N, input_dim) -> (N, output_dim=64).
    N, input_dim, output_dim = 16, 4, 64
    x = jax.random.normal(k_x, (N, input_dim), jnp.float32)
    params = init_params(k_p, input_dim, output_dim)

    out = mlp_forward(x, params)
    out = jax.block_until_ready(out)
    ref = mlp_reference(x, params)
    assert out.shape == (N, output_dim)
    assert jnp.allclose(out, ref, atol=1e-4, rtol=1e-4), "mismatch vs reference (small)"

    # Second check exercising the batch-pad path and a multi-step grid
    # (N=300 -> tile_batch=256, grid=2) with the module defaults (input_dim=1).
    N2, input_dim2, output_dim2 = 300, 1, 64
    x2 = jax.random.normal(k_x2, (N2, input_dim2), jnp.float32)
    params2 = init_params(k_p2, input_dim2, output_dim2)

    out2 = mlp_forward(x2, params2)
    out2 = jax.block_until_ready(out2)
    ref2 = mlp_reference(x2, params2)
    assert out2.shape == (N2, output_dim2)
    assert jnp.allclose(out2, ref2, atol=1e-4, rtol=1e-4), "mismatch vs reference (padded)"

    print("KERNEL_OK")
</pallas_src>

<mosaic_0001>
module attributes {stable_mosaic.version = 11 : i64} {
  func.func @mlp_kernel(%arg0: i32, %arg1: memref<16x4xf32, #tpu.memory_space<vmem>>, %arg2: memref<4x128xf32, #tpu.memory_space<vmem>>, %arg3: memref<1x128xf32, #tpu.memory_space<vmem>>, %arg4: memref<128x128xf32, #tpu.memory_space<vmem>>, %arg5: memref<1x128xf32, #tpu.memory_space<vmem>>, %arg6: memref<128x128xf32, #tpu.memory_space<vmem>>, %arg7: memref<1x128xf32, #tpu.memory_space<vmem>>, %arg8: memref<128x64xf32, #tpu.memory_space<vmem>>, %arg9: memref<1x64xf32, #tpu.memory_space<vmem>>, %arg10: memref<16x64xf32, #tpu.memory_space<vmem>>) attributes {dimension_semantics = [#tpu.dimension_semantics<parallel>], iteration_bounds = array<i64: 1>, scalar_prefetch = 0 : i64, scratch_operands = 0 : i64, tpu.core_type = #tpu.core_type<tc>, window_params = [{transform_indices = @transform_0, window_bounds = array<i64: 16, 4>}, {pipeline_mode = #tpu.pipeline_mode<synchronous>, transform_indices = @transform_1, window_bounds = array<i64: 4, 128>}, {pipeline_mode = #tpu.pipeline_mode<synchronous>, transform_indices = @transform_2, window_bounds = array<i64: 1, 128>}, {pipeline_mode = #tpu.pipeline_mode<synchronous>, transform_indices = @transform_3, window_bounds = array<i64: 128, 128>}, {pipeline_mode = #tpu.pipeline_mode<synchronous>, transform_indices = @transform_4, window_bounds = array<i64: 1, 128>}, {pipeline_mode = #tpu.pipeline_mode<synchronous>, transform_indices = @transform_5, window_bounds = array<i64: 128, 128>}, {pipeline_mode = #tpu.pipeline_mode<synchronous>, transform_indices = @transform_6, window_bounds = array<i64: 1, 128>}, {pipeline_mode = #tpu.pipeline_mode<synchronous>, transform_indices = @transform_7, window_bounds = array<i64: 128, 64>}, {pipeline_mode = #tpu.pipeline_mode<synchronous>, transform_indices = @transform_8, window_bounds = array<i64: 1, 64>}, {transform_indices = @transform_9, window_bounds = array<i64: 16, 64>}]} {
    %c0 = arith.constant 0 : index
    %c0_0 = arith.constant 0 : index
    %0 = vector.load %arg1[%c0, %c0_0] : memref<16x4xf32, #tpu.memory_space<vmem>>, vector<16x4xf32>
    %c0_1 = arith.constant 0 : index
    %c0_2 = arith.constant 0 : index
    %1 = vector.load %arg2[%c0_1, %c0_2] : memref<4x128xf32, #tpu.memory_space<vmem>>, vector<4x128xf32>
    %cst = arith.constant dense<0.000000e+00> : vector<16x128xf32>
    %2 = tpu.matmul %0, %1, %cst {dimension_numbers = #tpu.dot_dimension_numbers<[1], [0], [0], [1], [0, 0, 1, 1], [], []>} : vector<16x4xf32>, vector<4x128xf32>, vector<16x128xf32> -> vector<16x128xf32>
    %c0_3 = arith.constant 0 : index
    %c0_4 = arith.constant 0 : index
    %3 = vector.load %arg3[%c0_3, %c0_4] : memref<1x128xf32, #tpu.memory_space<vmem>>, vector<1x128xf32>
    %4 = vector.broadcast %3 : vector<1x128xf32> to vector<16x128xf32>
    %5 = arith.addf %2, %4 : vector<16x128xf32>
    %cst_5 = arith.constant 0.000000e+00 : f32
    %6 = vector.broadcast %cst_5 : f32 to vector<16x128xf32>
    %7 = arith.maximumf %5, %6 : vector<16x128xf32>
    %c0_6 = arith.constant 0 : index
    %c0_7 = arith.constant 0 : index
    %8 = vector.load %arg4[%c0_6, %c0_7] : memref<128x128xf32, #tpu.memory_space<vmem>>, vector<128x128xf32>
    %cst_8 = arith.constant dense<0.000000e+00> : vector<16x128xf32>
    %9 = tpu.matmul %7, %8, %cst_8 {dimension_numbers = #tpu.dot_dimension_numbers<[1], [0], [0], [1], [0, 0, 1, 1], [], []>} : vector<16x128xf32>, vector<128x128xf32>, vector<16x128xf32> -> vector<16x128xf32>
    %c0_9 = arith.constant 0 : index
    %c0_10 = arith.constant 0 : index
    %10 = vector.load %arg5[%c0_9, %c0_10] : memref<1x128xf32, #tpu.memory_space<vmem>>, vector<1x128xf32>
    %11 = vector.broadcast %10 : vector<1x128xf32> to vector<16x128xf32>
    %12 = arith.addf %9, %11 : vector<16x128xf32>
    %cst_11 = arith.constant 0.000000e+00 : f32
    %13 = vector.broadcast %cst_11 : f32 to vector<16x128xf32>
    %14 = arith.maximumf %12, %13 : vector<16x128xf32>
    %c0_12 = arith.constant 0 : index
    %c0_13 = arith.constant 0 : index
    %15 = vector.load %arg6[%c0_12, %c0_13] : memref<128x128xf32, #tpu.memory_space<vmem>>, vector<128x128xf32>
    %cst_14 = arith.constant dense<0.000000e+00> : vector<16x128xf32>
    %16 = tpu.matmul %14, %15, %cst_14 {dimension_numbers = #tpu.dot_dimension_numbers<[1], [0], [0], [1], [0, 0, 1, 1], [], []>} : vector<16x128xf32>, vector<128x128xf32>, vector<16x128xf32> -> vector<16x128xf32>
    %c0_15 = arith.constant 0 : index
    %c0_16 = arith.constant 0 : index
    %17 = vector.load %arg7[%c0_15, %c0_16] : memref<1x128xf32, #tpu.memory_space<vmem>>, vector<1x128xf32>
    %18 = vector.broadcast %17 : vector<1x128xf32> to vector<16x128xf32>
    %19 = arith.addf %16, %18 : vector<16x128xf32>
    %cst_17 = arith.constant 0.000000e+00 : f32
    %20 = vector.broadcast %cst_17 : f32 to vector<16x128xf32>
    %21 = arith.maximumf %19, %20 : vector<16x128xf32>
    %c0_18 = arith.constant 0 : index
    %c0_19 = arith.constant 0 : index
    %22 = vector.load %arg8[%c0_18, %c0_19] : memref<128x64xf32, #tpu.memory_space<vmem>>, vector<128x64xf32>
    %cst_20 = arith.constant dense<0.000000e+00> : vector<16x64xf32>
    %23 = tpu.matmul %21, %22, %cst_20 {dimension_numbers = #tpu.dot_dimension_numbers<[1], [0], [0], [1], [0, 0, 1, 1], [], []>} : vector<16x128xf32>, vector<128x64xf32>, vector<16x64xf32> -> vector<16x64xf32>
    %c0_21 = arith.constant 0 : index
    %c0_22 = arith.constant 0 : index
    %24 = vector.load %arg9[%c0_21, %c0_22] : memref<1x64xf32, #tpu.memory_space<vmem>>, vector<1x64xf32>
    %25 = vector.broadcast %24 : vector<1x64xf32> to vector<16x64xf32>
    %26 = arith.addf %23, %25 : vector<16x64xf32>
    %cst_23 = arith.constant 0.000000e+00 : f32
    %27 = vector.broadcast %cst_23 : f32 to vector<16x64xf32>
    %28 = arith.maximumf %26, %27 : vector<16x64xf32>
    %c0_24 = arith.constant 0 : index
    %c0_25 = arith.constant 0 : index
    %29 = vector.load %arg10[%c0_24, %c0_25] : memref<16x64xf32, #tpu.memory_space<vmem>>, vector<16x64xf32>
    tpu.vector_store %arg10[%c0_24, %c0_25], %28 {strides = array<i32>} : memref<16x64xf32, #tpu.memory_space<vmem>>, vector<16x64xf32>,
    return
  }
  func.func @transform_0(%arg0: i32) -> (i32, i32) {
    %c0_i32 = arith.constant 0 : i32
    %c0_i32_0 = arith.constant 0 : i32
    return %arg0, %c0_i32 : i32, i32
  }
  func.func @transform_1(%arg0: i32) -> (i32, i32) {
    %c0_i32 = arith.constant 0 : i32
    %c0_i32_0 = arith.constant 0 : i32
    %c0_i32_1 = arith.constant 0 : i32
    return %c0_i32, %c0_i32_0 : i32, i32
  }
  func.func @transform_2(%arg0: i32) -> (i32, i32) {
    %c0_i32 = arith.constant 0 : i32
    %c0_i32_0 = arith.constant 0 : i32
    %c0_i32_1 = arith.constant 0 : i32
    return %c0_i32, %c0_i32_0 : i32, i32
  }
  func.func @transform_3(%arg0: i32) -> (i32, i32) {
    %c0_i32 = arith.constant 0 : i32
    %c0_i32_0 = arith.constant 0 : i32
    %c0_i32_1 = arith.constant 0 : i32
    return %c0_i32, %c0_i32_0 : i32, i32
  }
  func.func @transform_4(%arg0: i32) -> (i32, i32) {
    %c0_i32 = arith.constant 0 : i32
    %c0_i32_0 = arith.constant 0 : i32
    %c0_i32_1 = arith.constant 0 : i32
    return %c0_i32, %c0_i32_0 : i32, i32
  }
  func.func @transform_5(%arg0: i32) -> (i32, i32) {
    %c0_i32 = arith.constant 0 : i32
    %c0_i32_0 = arith.constant 0 : i32
    %c0_i32_1 = arith.constant 0 : i32
    return %c0_i32, %c0_i32_0 : i32, i32
  }
  func.func @transform_6(%arg0: i32) -> (i32, i32) {
    %c0_i32 = arith.constant 0 : i32
    %c0_i32_0 = arith.constant 0 : i32
    %c0_i32_1 = arith.constant 0 : i32
    return %c0_i32, %c0_i32_0 : i32, i32
  }
  func.func @transform_7(%arg0: i32) -> (i32, i32) {
    %c0_i32 = arith.constant 0 : i32
    %c0_i32_0 = arith.constant 0 : i32
    %c0_i32_1 = arith.constant 0 : i32
    return %c0_i32, %c0_i32_0 : i32, i32
  }
  func.func @transform_8(%arg0: i32) -> (i32, i32) {
    %c0_i32 = arith.constant 0 : i32
    %c0_i32_0 = arith.constant 0 : i32
    %c0_i32_1 = arith.constant 0 : i32
    return %c0_i32, %c0_i32_0 : i32, i32
  }
  func.func @transform_9(%arg0: i32) -> (i32, i32) {
    %c0_i32 = arith.constant 0 : i32
    %c0_i32_0 = arith.constant 0 : i32
    return %arg0, %c0_i32 : i32, i32
  }
}

</mosaic_0001>

<llo_original>
// kernel: tpu_custom_call.1
$region0: #{tpu_custom_call.1}
  #allocation0 [shape = 'u32[]', space=smem, size = 0x4, offset = 0x4, fixed_abs, tag = 'smem constant byte address 0x4 - core index']
  #allocation1 [shape = 'u32[144,128]{1,0:T(1,128)}', space=vmem, size = 0x12000, scoped, tag = 'internal scratch']
  %s0 = inlined_call_operand.vmem [shape: f32[16,4], index: 0, kind: input, shape index: {}]
  %s1 = inlined_call_operand.vmem [shape: f32[4,128], index: 1, kind: input, shape index: {}]
  %s2 = inlined_call_operand.vmem [shape: f32[1,128], index: 2, kind: input, shape index: {}]
  %s3 = inlined_call_operand.vmem [shape: f32[128,128], index: 3, kind: input, shape index: {}]
  %s4 = inlined_call_operand.vmem [shape: f32[1,128], index: 4, kind: input, shape index: {}]
  %s5 = inlined_call_operand.hbm [shape: f32[128,128], index: 5, kind: input, shape index: {}]
  %s6 = inlined_call_operand.vmem [shape: f32[1,128], index: 6, kind: input, shape index: {}]
  %s7 = inlined_call_operand.vmem [shape: f32[128,64], index: 7, kind: input, shape index: {}]
  %s8 = inlined_call_operand.vmem [shape: f32[1,64], index: 8, kind: input, shape index: {}]
  %s9 = inlined_call_operand.hbm [shape: f32[16,64], index: 9, kind: output, shape index: {}]
  %s10 = sld [smem:[#allocation0]]
  $region50: #{tpu_custom_call.1} parent=0
    _
  %s12 = ssub.s32 1, %s10
  %s13 = scalar_select 0, %s12, %s10
  $region1: #{tpu_custom_call.1} parent=0
    #allocation2 [shape = 'u8[65536]{0}', space=vmem, size = 0x10000, scoped, tag = 'input window, operand 5, single buffered']
    #allocation3 [shape = 's32[1]{0}', space=sflag, size = 0x4, scoped, tag = 'scoped memory for tpu_custom_call.1']
    #allocation4 [shape = 's32[1]{0}', space=sflag, size = 0x4, scoped, tag = 'scoped memory for tpu_custom_call.1']
    #allocation5 [shape = 'u8[8192]{0}', space=vmem, size = 0x2000, scoped, tag = 'output window, operand 0, single buffered']
    %14 = vsyncpa [#allocation3], 0
    %15 = vsyncpa [#allocation4], 0
    // Predicated region
    $region2: #{tpu_custom_call.1} parent=1 // pred_check
      _
    $region3: #{tpu_custom_call.1} parent=1 // pred_check_branch
      %17 = sbr.rel (0) target = $region5
    $region4: #{tpu_custom_call.1} parent=1 // pred_region
      _
    $region5: #{tpu_custom_call.1} parent=1 // pred_fallthru
      _
    // Predicated region
    $region6: #{tpu_custom_call.1} parent=1 // pred_check
      _
    $region7: #{tpu_custom_call.1} parent=1 // pred_check_branch
      %19 = sbr.rel (0) target = $region9
    $region8: #{tpu_custom_call.1} parent=1 // pred_region
      _
    $region9: #{tpu_custom_call.1} parent=1 // pred_fallthru
      _
    // Predicated region
    $region10: #{tpu_custom_call.1} parent=1 // pred_check
      _
    $region11: #{tpu_custom_call.1} parent=1 // pred_check_branch
      %21 = sbr.rel (0) target = $region13
    $region12: #{tpu_custom_call.1} parent=1 // pred_region
      _
    $region13: #{tpu_custom_call.1} parent=1 // pred_fallthru
      _
    // Predicated region
    $region14: #{tpu_custom_call.1} parent=1 // pred_check
      _
    $region15: #{tpu_custom_call.1} parent=1 // pred_check_branch
      %23 = sbr.rel (0) target = $region17
    $region16: #{tpu_custom_call.1} parent=1 // pred_region
      _
    $region17: #{tpu_custom_call.1} parent=1 // pred_fallthru
      _
    // Predicated region
    $region18: #{tpu_custom_call.1} parent=1 // pred_check
      _
    $region19: #{tpu_custom_call.1} parent=1 // pred_check_branch
      %25 = sbr.rel (0) target = $region21
    $region20: #{tpu_custom_call.1} parent=1 // pred_region
      _
    $region21: #{tpu_custom_call.1} parent=1 // pred_fallthru
      _
    // Predicated region
    $region22: #{tpu_custom_call.1} parent=1 // pred_check
      _
    $region23: #{tpu_custom_call.1} parent=1 // pred_check_branch
      %27 = sbr.rel (0) target = $region25
    $region24: #{tpu_custom_call.1} parent=1 // pred_region
      %s29 = ssub.s32 2048, 2048
      %30 = vsyncadd [#allocation3], %s29
      %s31 = sshll.u32 [#allocation2], 4
      %s32 = int_to_ptr.vmem [resolvable:$true] %s31
      %37 = dma.hbm_to_vmem [thread:$0]  %s5, 2048, %s32, [#allocation3], 128, 128, 8
    $region25: #{tpu_custom_call.1} parent=1 // pred_fallthru
      _
    // Predicated region
    $region26: #{tpu_custom_call.1} parent=1 // pred_check
      _
    $region27: #{tpu_custom_call.1} parent=1 // pred_check_branch
      %39 = sbr.rel (0) target = $region29
    $region28: #{tpu_custom_call.1} parent=1 // pred_region
      _
    $region29: #{tpu_custom_call.1} parent=1 // pred_fallthru
      _
    // Predicated region
    $region30: #{tpu_custom_call.1} parent=1 // pred_check
      _
    $region31: #{tpu_custom_call.1} parent=1 // pred_check_branch
      %41 = sbr.rel (0) target = $region33
    $region32: #{tpu_custom_call.1} parent=1 // pred_region
      _
    $region33: #{tpu_custom_call.1} parent=1 // pred_fallthru
      _
    // Predicated region
    $region34: #{tpu_custom_call.1} parent=1 // pred_check
      _
    $region35: #{tpu_custom_call.1} parent=1 // pred_check_branch
      %43 = sbr.rel (0) target = $region37
    $region36: #{tpu_custom_call.1} parent=1 // pred_region
      _
    $region37: #{tpu_custom_call.1} parent=1 // pred_fallthru
      _
    // Predicated region
    $region38: #{tpu_custom_call.1} parent=1 // pred_check
      _
    $region39: #{tpu_custom_call.1} parent=1 // pred_check_branch
      %45 = sbr.rel (0) target = $region41
    $region40: #{tpu_custom_call.1} parent=1 // pred_region
      %46 = dma.done [#allocation3], 2048
    $region41: #{tpu_custom_call.1} parent=1 // pred_fallthru
      _
    %v47 = vld [vmem:[%s0] sm:$0xff]
    %v48 = vld [vmem:[%s0 + $0x8] sm:$0xff]
    %v49 = vld [vmem:[%s1] sm:$0xf]
    %v50 = vld [vmem:[%s2] sm:$0x1]
    %v52 = vlaneseq
    %v53 = vshrl.u32 %v52, 7
    %v54 = vsub.s32 0, %v53
    %v55 = vrot.slane %v50, %v54
    %vm57 = vcmask 31744
    %v59 = vsel %vm57, %v47, 0
    %v62 = vsel %vm57, %v48, 0
    %vm64 = vcmask 1043456
    %v66 = vsel %vm64, %v49, 0
    %68 = vmatprep.subr.mxu0 0.0
    %69 = vmatpush1.msra.mxu0 %v66
    %70 = vmatprep.subr.mxu0 0.0
    %71 = vmatpush1.msra.mxu0 0.0
    %72 = vmatprep.subr.mxu0 0.0
    %73 = vmatpush1.msra.mxu0 0.0
    %74 = vmatprep.subr.mxu0 0.0
    %75 = vmatpush1.msra.mxu0 0.0
    %76 = vmatprep.subr.mxu0 0.0
    %77 = vmatpush1.msra.mxu0 0.0
    %78 = vmatprep.subr.mxu0 0.0
    %79 = vmatpush1.msra.mxu0 0.0
    %80 = vmatprep.subr.mxu0 0.0
    %81 = vmatpush1.msra.mxu0 0.0
    %82 = vmatprep.subr.mxu0 0.0
    %83 = vmatpush1.msra.mxu0 0.0
    %84 = vmatprep.subr.mxu0 0.0
    %85 = vmatpush1.msra.mxu0 0.0
    %86 = vmatprep.subr.mxu0 0.0
    %87 = vmatpush1.msra.mxu0 0.0
    %88 = vmatprep.subr.mxu0 0.0
    %89 = vmatpush1.msra.mxu0 0.0
    %90 = vmatprep.subr.mxu0 0.0
    %91 = vmatpush1.msra.mxu0 0.0
    %92 = vmatprep.subr.mxu0 0.0
    %93 = vmatpush1.msra.mxu0 0.0
    %94 = vmatprep.subr.mxu0 0.0
    %95 = vmatpush1.msra.mxu0 0.0
    %96 = vmatprep.subr.mxu0 0.0
    %97 = vmatpush1.msra.mxu0 0.0
    %98 = vmatprep.subr.mxu0 0.0
    %99 = vmatpush1.msra.mxu0 0.0
    %100 = vmatprep.subr.mxu0 0.0
    %101 = vmatpush1.msra.mxu0 0.0
    %102 = vmatprep.subr.mxu0 0.0
    %103 = vmatpush1.msra.mxu0 0.0
    %104 = vmatprep.subr.mxu0 0.0
    %105 = vmatpush1.msra.mxu0 0.0
    %106 = vmatprep.subr.mxu0 0.0
    %107 = vmatpush1.msra.mxu0 0.0
    %108 = vmatprep.subr.mxu0 0.0
    %109 = vmatpush1.msra.mxu0 0.0
    %110 = vmatprep.subr.mxu0 0.0
    %111 = vmatpush1.msra.mxu0 0.0
    %112 = vmatprep.subr.mxu0 0.0
    %113 = vmatpush1.msra.mxu0 0.0
    %114 = vmatprep.subr.mxu0 0.0
    %115 = vmatpush1.msra.mxu0 0.0
    %116 = vmatprep.subr.mxu0 0.0
    %117 = vmatpush1.msra.mxu0 0.0
    %118 = vmatprep.subr.mxu0 0.0
    %119 = vmatpush1.msra.mxu0 0.0
    %120 = vmatprep.subr.mxu0 0.0
    %121 = vmatpush1.msra.mxu0 0.0
    %122 = vmatprep.subr.mxu0 0.0
    %123 = vmatpush1.msra.mxu0 0.0
    %124 = vmatprep.subr.mxu0 0.0
    %125 = vmatpush1.msra.mxu0 0.0
    %126 = vmatprep.subr.mxu0 0.0
    %127 = vmatpush1.msra.mxu0 0.0
    %128 = vmatprep.subr.mxu0 0.0
    %129 = vmatpush1.msra.mxu0 0.0
    %130 = vmatprep.subr.mxu0 0.0
    %131 = vmatpush1.msra.mxu0 0.0
    %132 = vmatprep.mubr.f32.mxu0 0.0
    %133 = vmatmul.mubr.f32.gmra.mrb[0].mxu0 %v59
    %v134 = vpop.f32.mrb[0].mxu0
    %v135 = vadd.f32 %v55, %v134
    %v136 = vpop.f32.mrb[0].mxu0
    %137 = vmatprep.mubr.f32.mxu0 0.0
    %138 = vmatmul.mubr.f32.gmra.mrb[0].mxu0 %v62
    %v139 = vpop.f32.mrb[0].mxu0
    %v140 = vadd.f32 %v55, %v139
    %v141 = vpop.f32.mrb[0].mxu0
    %142 = vdwg.mxu0
    %v143 = vmax.f32 %v135, 0.0
    %v144 = vmax.f32 %v140, 0.0
    %v145 = vld [vmem:[%s3] sm:$0xff]
    %v146 = vld [vmem:[%s3 + $0x8] sm:$0xff]
    %v147 = vld [vmem:[%s3 + $0x10] sm:$0xff]
    %v148 = vld [vmem:[%s3 + $0x18] sm:$0xff]
    %v149 = vld [vmem:[%s3 + $0x20] sm:$0xff]
    %v150 = vld [vmem:[%s3 + $0x28] sm:$0xff]
    %v151 = vld [vmem:[%s3 + $0x30] sm:$0xff]
    %v152 = vld [vmem:[%s3 + $0x38] sm:$0xff]
    %v153 = vld [vmem:[%s3 + $0x40] sm:$0xff]
    %v154 = vld [vmem:[%s3 + $0x48] sm:$0xff]
    %v155 = vld [vmem:[%s3 + $0x50] sm:$0xff]
    %v156 = vld [vmem:[%s3 + $0x58] sm:$0xff]
    %v157 = vld [vmem:[%s3 + $0x60] sm:$0xff]
    %v158 = vld [vmem:[%s3 + $0x68] sm:$0xff]
    %v159 = vld [vmem:[%s3 + $0x70] sm:$0xff]
    %v160 = vld [vmem:[%s3 + $0x78] sm:$0xff]
    %v161 = vld [vmem:[%s4] sm:$0x1]
    %v163 = vlaneseq
    %v164 = vshrl.u32 %v163, 7
    %v165 = vsub.s32 0, %v164
    %v166 = vrot.slane %v161, %v165
    %168 = vmatprep.subr.mxu0 0.0
    %169 = vmatpush1.msra.mxu0 %v145
    %170 = vmatprep.subr.mxu0 0.0
    %171 = vmatpush1.msra.mxu0 %v146
    %172 = vmatprep.subr.mxu0 0.0
    %173 = vmatpush1.msra.mxu0 %v147
    %174 = vmatprep.subr.mxu0 0.0
    %175 = vmatpush1.msra.mxu0 %v148
    %176 = vmatprep.subr.mxu0 0.0
    %177 = vmatpush1.msra.mxu0 %v149
    %178 = vmatprep.subr.mxu0 0.0
    %179 = vmatpush1.msra.mxu0 %v150
    %180 = vmatprep.subr.mxu0 0.0
    %181 = vmatpush1.msra.mxu0 %v151
    %182 = vmatprep.subr.mxu0 0.0
    %183 = vmatpush1.msra.mxu0 %v152
    %184 = vmatprep.subr.mxu0 0.0
    %185 = vmatpush1.msra.mxu0 %v153
    %186 = vmatprep.subr.mxu0 0.0
    %187 = vmatpush1.msra.mxu0 %v154
    %188 = vmatprep.subr.mxu0 0.0
    %189 = vmatpush1.msra.mxu0 %v155
    %190 = vmatprep.subr.mxu0 0.0
    %191 = vmatpush1.msra.mxu0 %v156
    %192 = vmatprep.subr.mxu0 0.0
    %193 = vmatpush1.msra.mxu0 %v157
    %194 = vmatprep.subr.mxu0 0.0
    %195 = vmatpush1.msra.mxu0 %v158
    %196 = vmatprep.subr.mxu0 0.0
    %197 = vmatpush1.msra.mxu0 %v159
    %198 = vmatprep.subr.mxu0 0.0
    %199 = vmatpush1.msra.mxu0 %v160
    %200 = vmatprep.subr.mxu0 0.0
    %201 = vmatpush1.msra.mxu0 0.0
    %202 = vmatprep.subr.mxu0 0.0
    %203 = vmatpush1.msra.mxu0 0.0
    %204 = vmatprep.subr.mxu0 0.0
    %205 = vmatpush1.msra.mxu0 0.0
    %206 = vmatprep.subr.mxu0 0.0
    %207 = vmatpush1.msra.mxu0 0.0
    %208 = vmatprep.subr.mxu0 0.0
    %209 = vmatpush1.msra.mxu0 0.0
    %210 = vmatprep.subr.mxu0 0.0
    %211 = vmatpush1.msra.mxu0 0.0
    %212 = vmatprep.subr.mxu0 0.0
    %213 = vmatpush1.msra.mxu0 0.0
    %214 = vmatprep.subr.mxu0 0.0
    %215 = vmatpush1.msra.mxu0 0.0
    %216 = vmatprep.subr.mxu0 0.0
    %217 = vmatpush1.msra.mxu0 0.0
    %218 = vmatprep.subr.mxu0 0.0
    %219 = vmatpush1.msra.mxu0 0.0
    %220 = vmatprep.subr.mxu0 0.0
    %221 = vmatpush1.msra.mxu0 0.0
    %222 = vmatprep.subr.mxu0 0.0
    %223 = vmatpush1.msra.mxu0 0.0
    %224 = vmatprep.subr.mxu0 0.0
    %225 = vmatpush1.msra.mxu0 0.0
    %226 = vmatprep.subr.mxu0 0.0
    %227 = vmatpush1.msra.mxu0 0.0
    %228 = vmatprep.subr.mxu0 0.0
    %229 = vmatpush1.msra.mxu0 0.0
    %230 = vmatprep.subr.mxu0 0.0
    %231 = vmatpush1.msra.mxu0 0.0
    %232 = vmatprep.mubr.f32.mxu0 0.0
    %233 = vmatmul.mubr.f32.gmra.mrb[0].mxu0 %v143
    %v234 = vpop.f32.mrb[0].mxu0
    %v235 = vadd.f32 %v166, %v234
    %v236 = vpop.f32.mrb[0].mxu0
    %237 = vmatprep.mubr.f32.mxu0 0.0
    %238 = vmatmul.mubr.f32.gmra.mrb[0].mxu0 %v144
    %v239 = vpop.f32.mrb[0].mxu0
    %v240 = vadd.f32 %v166, %v239
    %v241 = vpop.f32.mrb[0].mxu0
    %242 = vdwg.mxu0
    %v243 = vmax.f32 %v235, 0.0
    %v244 = vmax.f32 %v240, 0.0
    %v245 = vld [vmem:[#allocation2] sm:$0xff]
    %v246 = vld [vmem:[#allocation2 + $0x8] sm:$0xff]
    %v247 = vld [vmem:[#allocation2 + $0x10] sm:$0xff]
    %v248 = vld [vmem:[#allocation2 + $0x18] sm:$0xff]
    %v249 = vld [vmem:[#allocation2 + $0x20] sm:$0xff]
    %v250 = vld [vmem:[#allocation2 + $0x28] sm:$0xff]
    %v251 = vld [vmem:[#allocation2 + $0x30] sm:$0xff]
    %v252 = vld [vmem:[#allocation2 + $0x38] sm:$0xff]
    %v253 = vld [vmem:[#allocation2 + $0x40] sm:$0xff]
    %v254 = vld [vmem:[#allocation2 + $0x48] sm:$0xff]
    %v255 = vld [vmem:[#allocation2 + $0x50] sm:$0xff]
    %v256 = vld [vmem:[#allocation2 + $0x58] sm:$0xff]
    %v257 = vld [vmem:[#allocation2 + $0x60] sm:$0xff]
    %v258 = vld [vmem:[#allocation2 + $0x68] sm:$0xff]
    %v259 = vld [vmem:[#allocation2 + $0x70] sm:$0xff]
    %v260 = vld [vmem:[#allocation2 + $0x78] sm:$0xff]
    %v261 = vld [vmem:[%s6] sm:$0x1]
    %v263 = vlaneseq
    %v264 = vshrl.u32 %v263, 7
    %v265 = vsub.s32 0, %v264
    %v266 = vrot.slane %v261, %v265
    %268 = vmatprep.subr.mxu0 0.0
    %269 = vmatpush1.msra.mxu0 %v245
    %270 = vmatprep.subr.mxu0 0.0
    %271 = vmatpush1.msra.mxu0 %v246
    %272 = vmatprep.subr.mxu0 0.0
    %273 = vmatpush1.msra.mxu0 %v247
    %274 = vmatprep.subr.mxu0 0.0
    %275 = vmatpush1.msra.mxu0 %v248
    %276 = vmatprep.subr.mxu0 0.0
    %277 = vmatpush1.msra.mxu0 %v249
    %278 = vmatprep.subr.mxu0 0.0
    %279 = vmatpush1.msra.mxu0 %v250
    %280 = vmatprep.subr.mxu0 0.0
    %281 = vmatpush1.msra.mxu0 %v251
    %282 = vmatprep.subr.mxu0 0.0
    %283 = vmatpush1.msra.mxu0 %v252
    %284 = vmatprep.subr.mxu0 0.0
    %285 = vmatpush1.msra.mxu0 %v253
    %286 = vmatprep.subr.mxu0 0.0
    %287 = vmatpush1.msra.mxu0 %v254
    %288 = vmatprep.subr.mxu0 0.0
    %289 = vmatpush1.msra.mxu0 %v255
    %290 = vmatprep.subr.mxu0 0.0
    %291 = vmatpush1.msra.mxu0 %v256
    %292 = vmatprep.subr.mxu0 0.0
    %293 = vmatpush1.msra.mxu0 %v257
    %294 = vmatprep.subr.mxu0 0.0
    %295 = vmatpush1.msra.mxu0 %v258
    %296 = vmatprep.subr.mxu0 0.0
    %297 = vmatpush1.msra.mxu0 %v259
    %298 = vmatprep.subr.mxu0 0.0
    %299 = vmatpush1.msra.mxu0 %v260
    %300 = vmatprep.subr.mxu0 0.0
    %301 = vmatpush1.msra.mxu0 0.0
    %302 = vmatprep.subr.mxu0 0.0
    %303 = vmatpush1.msra.mxu0 0.0
    %304 = vmatprep.subr.mxu0 0.0
    %305 = vmatpush1.msra.mxu0 0.0
    %306 = vmatprep.subr.mxu0 0.0
    %307 = vmatpush1.msra.mxu0 0.0
    %308 = vmatprep.subr.mxu0 0.0
    %309 = vmatpush1.msra.mxu0 0.0
    %310 = vmatprep.subr.mxu0 0.0
    %311 = vmatpush1.msra.mxu0 0.0
    %312 = vmatprep.subr.mxu0 0.0
    %313 = vmatpush1.msra.mxu0 0.0
    %314 = vmatprep.subr.mxu0 0.0
    %315 = vmatpush1.msra.mxu0 0.0
    %316 = vmatprep.subr.mxu0 0.0
    %317 = vmatpush1.msra.mxu0 0.0
    %318 = vmatprep.subr.mxu0 0.0
    %319 = vmatpush1.msra.mxu0 0.0
    %320 = vmatprep.subr.mxu0 0.0
    %321 = vmatpush1.msra.mxu0 0.0
    %322 = vmatprep.subr.mxu0 0.0
    %323 = vmatpush1.msra.mxu0 0.0
    %324 = vmatprep.subr.mxu0 0.0
    %325 = vmatpush1.msra.mxu0 0.0
    %326 = vmatprep.subr.mxu0 0.0
    %327 = vmatpush1.msra.mxu0 0.0
    %328 = vmatprep.subr.mxu0 0.0
    %329 = vmatpush1.msra.mxu0 0.0
    %330 = vmatprep.subr.mxu0 0.0
    %331 = vmatpush1.msra.mxu0 0.0
    %332 = vmatprep.mubr.f32.mxu0 0.0
    %333 = vmatmul.mubr.f32.gmra.mrb[0].mxu0 %v243
    %v334 = vpop.f32.mrb[0].mxu0
    %v335 = vadd.f32 %v266, %v334
    %v336 = vpop.f32.mrb[0].mxu0
    %337 = vmatprep.mubr.f32.mxu0 0.0
    %338 = vmatmul.mubr.f32.gmra.mrb[0].mxu0 %v244
    %v339 = vpop.f32.mrb[0].mxu0
    %v340 = vadd.f32 %v266, %v339
    %v341 = vpop.f32.mrb[0].mxu0
    %342 = vdwg.mxu0
    %v343 = vmax.f32 %v335, 0.0
    %v344 = vmax.f32 %v340, 0.0
    %v345 = vld [vmem:[%s7] sm:$0xff]
    %v346 = vld [vmem:[%s7 + $0x8] sm:$0xff]
    %v347 = vld [vmem:[%s7 + $0x10] sm:$0xff]
    %v348 = vld [vmem:[%s7 + $0x18] sm:$0xff]
    %v349 = vld [vmem:[%s7 + $0x20] sm:$0xff]
    %v350 = vld [vmem:[%s7 + $0x28] sm:$0xff]
    %v351 = vld [vmem:[%s7 + $0x30] sm:$0xff]
    %v352 = vld [vmem:[%s7 + $0x38] sm:$0xff]
    %v353 = vld [vmem:[%s7 + $0x40] sm:$0xff]
    %v354 = vld [vmem:[%s7 + $0x48] sm:$0xff]
    %v355 = vld [vmem:[%s7 + $0x50] sm:$0xff]
    %v356 = vld [vmem:[%s7 + $0x58] sm:$0xff]
    %v357 = vld [vmem:[%s7 + $0x60] sm:$0xff]
    %v358 = vld [vmem:[%s7 + $0x68] sm:$0xff]
    %v359 = vld [vmem:[%s7 + $0x70] sm:$0xff]
    %v360 = vld [vmem:[%s7 + $0x78] sm:$0xff]
    %v361 = vld [vmem:[%s8] sm:$0x1]
    %v363 = vlaneseq
    %v364 = vshrl.u32 %v363, 7
    %v365 = vsub.s32 0, %v364
    %v366 = vrot.slane %v361, %v365
    %368 = vmatprep.subr.mxu0 0.0
    %369 = vmatpush1.msra.mxu0 %v345
    %370 = vmatprep.subr.mxu0 0.0
    %371 = vmatpush1.msra.mxu0 %v346
    %372 = vmatprep.subr.mxu0 0.0
    %373 = vmatpush1.msra.mxu0 %v347
    %374 = vmatprep.subr.mxu0 0.0
    %375 = vmatpush1.msra.mxu0 %v348
    %376 = vmatprep.subr.mxu0 0.0
    %377 = vmatpush1.msra.mxu0 %v349
    %378 = vmatprep.subr.mxu0 0.0
    %379 = vmatpush1.msra.mxu0 %v350
    %380 = vmatprep.subr.mxu0 0.0
    %381 = vmatpush1.msra.mxu0 %v351
    %382 = vmatprep.subr.mxu0 0.0
    %383 = vmatpush1.msra.mxu0 %v352
    %384 = vmatprep.subr.mxu0 0.0
    %385 = vmatpush1.msra.mxu0 %v353
    %386 = vmatprep.subr.mxu0 0.0
    %387 = vmatpush1.msra.mxu0 %v354
    %388 = vmatprep.subr.mxu0 0.0
    %389 = vmatpush1.msra.mxu0 %v355
    %390 = vmatprep.subr.mxu0 0.0
    %391 = vmatpush1.msra.mxu0 %v356
    %392 = vmatprep.subr.mxu0 0.0
    %393 = vmatpush1.msra.mxu0 %v357
    %394 = vmatprep.subr.mxu0 0.0
    %395 = vmatpush1.msra.mxu0 %v358
    %396 = vmatprep.subr.mxu0 0.0
    %397 = vmatpush1.msra.mxu0 %v359
    %398 = vmatprep.subr.mxu0 0.0
    %399 = vmatpush1.msra.mxu0 %v360
    %400 = vmatprep.subr.mxu0 0.0
    %401 = vmatpush1.msra.mxu0 0.0
    %402 = vmatprep.subr.mxu0 0.0
    %403 = vmatpush1.msra.mxu0 0.0
    %404 = vmatprep.subr.mxu0 0.0
    %405 = vmatpush1.msra.mxu0 0.0
    %406 = vmatprep.subr.mxu0 0.0
    %407 = vmatpush1.msra.mxu0 0.0
    %408 = vmatprep.subr.mxu0 0.0
    %409 = vmatpush1.msra.mxu0 0.0
    %410 = vmatprep.subr.mxu0 0.0
    %411 = vmatpush1.msra.mxu0 0.0
    %412 = vmatprep.subr.mxu0 0.0
    %413 = vmatpush1.msra.mxu0 0.0
    %414 = vmatprep.subr.mxu0 0.0
    %415 = vmatpush1.msra.mxu0 0.0
    %416 = vmatprep.subr.mxu0 0.0
    %417 = vmatpush1.msra.mxu0 0.0
    %418 = vmatprep.subr.mxu0 0.0
    %419 = vmatpush1.msra.mxu0 0.0
    %420 = vmatprep.subr.mxu0 0.0
    %421 = vmatpush1.msra.mxu0 0.0
    %422 = vmatprep.subr.mxu0 0.0
    %423 = vmatpush1.msra.mxu0 0.0
    %424 = vmatprep.subr.mxu0 0.0
    %425 = vmatpush1.msra.mxu0 0.0
    %426 = vmatprep.subr.mxu0 0.0
    %427 = vmatpush1.msra.mxu0 0.0
    %428 = vmatprep.subr.mxu0 0.0
    %429 = vmatpush1.msra.mxu0 0.0
    %430 = vmatprep.subr.mxu0 0.0
    %431 = vmatpush1.msra.mxu0 0.0
    %432 = vmatprep.mubr.f32.mxu0 0.0
    %433 = vmatmul.mubr.f32.gmra.mrb[0].mxu0 %v343
    %v434 = vpop.f32.mrb[0].mxu0
    %v435 = vadd.f32 %v366, %v434
    %v436 = vpop.f32.mrb[0].mxu0
    %437 = vmatprep.mubr.f32.mxu0 0.0
    %438 = vmatmul.mubr.f32.gmra.mrb[0].mxu0 %v344
    %v439 = vpop.f32.mrb[0].mxu0
    %v440 = vadd.f32 %v366, %v439
    %v441 = vpop.f32.mrb[0].mxu0
    %442 = vdwg.mxu0
    %v443 = vmax.f32 %v435, 0.0
    %v444 = vmax.f32 %v440, 0.0
    %vm445 = vcmask 523264
    %446 = vst.msk [vmem:[#allocation5] sm:$0xff] %vm445, %v443
    %447 = vst.msk [vmem:[#allocation5 + $0x8] sm:$0xff] %vm445, %v444
    // Predicated region
    $region42: #{tpu_custom_call.1} parent=1 // pred_check
      _
    $region43: #{tpu_custom_call.1} parent=1 // pred_check_branch
      %449 = sbr.rel (0) target = $region45
    $region44: #{tpu_custom_call.1} parent=1 // pred_region
      %s451 = ssub.s32 256, 256
      %452 = vsyncadd [#allocation4], %s451
      %s453 = sshll.u32 [#allocation5], 4
      %s454 = int_to_ptr.vmem [resolvable:$true] %s453
      %459 = dma.vmem_to_hbm [thread:$0]  %s454, 256, %s9, [#allocation4], 128, 128, 8
    $region45: #{tpu_custom_call.1} parent=1 // pred_fallthru
      _
    // Predicated region
    $region46: #{tpu_custom_call.1} parent=1 // pred_check
      _
    $region47: #{tpu_custom_call.1} parent=1 // pred_check_branch
      %461 = sbr.rel (0) target = $region49
    $region48: #{tpu_custom_call.1} parent=1 // pred_region
      %462 = dma.done [#allocation4], 256
    $region49: #{tpu_custom_call.1} parent=1 // pred_fallthru
      _
    %463 = vsyncpa [#allocation3], 1
    %464 = vsyncpa [#allocation4], 1

</llo_original>
